<compile_context>
chip_gen: v6e
topology: v6e:2x2x1
jax: 0.10.0
libtpu: 0.0.40
codegen_flags: <defaults>
</compile_context>

<pallas_src>
import math

import jax
import jax.numpy as jnp
from jax.experimental import pallas as pl
from jax.experimental.pallas import tpu as pltpu


def _embed_kernel(patch_ref, w_ref, pos_ref, out_ref):
    # patch_ref: (TM, K)  flattened-patch rows (M = B*N collapsed on the host)
    # w_ref:     (K, E)   flattened conv weight          (grid-invariant, resident)
    # pos_ref:   (TM, E)  pos-emb + conv-bias, tiled     (grid-invariant, resident)
    # out_ref:   (TM, E)
    acc = jnp.dot(patch_ref[...], w_ref[...],
                  preferred_element_type=jnp.float32)          # MXU
    out_ref[...] = (acc + pos_ref[...]).astype(out_ref.dtype)  # VPU + lane-dense store


def _vmem_capacity_bytes():
    try:
        return int(pltpu.get_tpu_info().vmem_capacity_bytes)
    except Exception:
        return 64 * 1024 * 1024  # conservative (v7x per-core VMEM)


def embeddings_forward(x, conv_w, conv_b, pos_emb, patch_size,
                       *, target_rows=2048, compute_dtype=None):
    """Equivalent of Embeddings.forward.

    x:       (B, C, D, H, W)  float32
    conv_w:  (E, C, p, p, p)  Conv3d weight
    conv_b:  (E,)             Conv3d bias
    pos_emb: (1, N, E)        position embeddings
    returns  (B, N, E)
    """
    B, C, D, H, W = x.shape
    E = conv_w.shape[0]
    p = patch_size
    nd, nh, nw = D // p, H // p, W // p
    N = nd * nh * nw
    K = C * p * p * p
    M = B * N

    # --- glue: patchify (single fused XLA relayout pass, see TODO above) -------
    # K flattened in (C, kd, kh, kw) order (matches Conv3d weight layout); rows
    # iterate (b, dd, hh, ww) (matches rearrange('b n h w d -> b (h w d) n')).
    xp = x.reshape(B, C, nd, p, nh, p, nw, p)
    xp = jnp.transpose(xp, (0, 2, 4, 6, 1, 3, 5, 7))
    patches = xp.reshape(M, K)

    # Conv3d with kernel==stride == matmul against the flattened weight.
    w_mat = conv_w.reshape(E, K).T                                     # (K, E)
    pos_bias = (pos_emb.reshape(N, E) + conv_b.reshape(1, E)).astype(jnp.float32)

    if compute_dtype is not None:          # e.g. jnp.bfloat16 on v6e/v7x
        patches = patches.astype(compute_dtype)
        w_mat = w_mat.astype(compute_dtype)

    in_item = jnp.dtype(patches.dtype).itemsize
    out_item = jnp.dtype(x.dtype).itemsize

    # --- tile M directly: TM = t*N rows per step (no divisibility demand on B) --
    vmem_cap = _vmem_capacity_bytes()
    vmem_budget = int(0.6 * vmem_cap)      # leave headroom for compiler scratch

    t = max(1, min(B, target_rows // max(N, 1)))
    if B >= 2:
        # >= 2 "parallel" grid steps: uses both v7x TensorCores and lets the
        # v5e/v6e pipeline overlap DMA with the matmul.
        t = min(t, max(1, B // 2))
    # Sublane alignment: TM must be a multiple of 8 (f32) unless it spans all of M.
    align = 8 // math.gcd(8, N)
    t = max(align, (t // align) * align)

    def _tile_bytes(t_):
        tm_ = t_ * N
        return (2 * tm_ * K * in_item      # patch blocks (double buffered)
                + 2 * tm_ * E * out_item   # output blocks
                + 2 * tm_ * E * 4          # pos block
                + 2 * K * E * in_item)     # weight block

    while t > align and _tile_bytes(t) > vmem_budget:
        t -= align

    if t >= B:
        TM, grid_m = M, 1                  # single full block (dims == array dims)
    else:
        TM, grid_m = t * N, pl.cdiv(B, t)

    pos_tiled = jnp.tile(pos_bias, (TM // N, 1))       # (TM, E), built once on host

    # Derived, generation-aware VMEM limit (never the full physical capacity).
    vmem_limit = min(int(0.75 * vmem_cap),
                     max(32 * 1024 * 1024,
                         int(1.5 * _tile_bytes(max(t, 1))) + (4 << 20)))

    flops = 2 * M * K * E
    bytes_accessed = (M * K * in_item + K * E * in_item
                      + TM * E * 4 + M * E * out_item)

    out = pl.pallas_call(
        _embed_kernel,
        out_shape=jax.ShapeDtypeStruct((M, E), x.dtype),
        grid_spec=pltpu.PrefetchScalarGridSpec(
            num_scalar_prefetch=0,
            grid=(grid_m,),
            in_specs=[
                pl.BlockSpec((TM, K), lambda i: (i, 0)),
                pl.BlockSpec((K, E), lambda i: (0, 0)),   # grid-invariant -> resident
                pl.BlockSpec((TM, E), lambda i: (0, 0)),  # grid-invariant -> resident
            ],
            out_specs=pl.BlockSpec((TM, E), lambda i: (i, 0)),
        ),
        compiler_params=pltpu.CompilerParams(
            dimension_semantics=("parallel",),
            vmem_limit_bytes=vmem_limit,
        ),
        cost_estimate=pl.CostEstimate(
            flops=flops, transcendentals=0, bytes_accessed=bytes_accessed),
    )(patches, w_mat, pos_tiled)

    # Rows back to (B, N, E) (free reshape).  Dropout(p=0.0) -> identity.
    return out.reshape(B, N, E)


def _reference(x, conv_w, conv_b, pos_emb, patch_size):
    """Pure-JAX reference (same math, no Pallas)."""
    B, C, D, H, W = x.shape
    E = conv_w.shape[0]
    p = patch_size
    nd, nh, nw = D // p, H // p, W // p
    N = nd * nh * nw
    K = C * p * p * p
    xp = x.reshape(B, C, nd, p, nh, p, nw, p)
    xp = jnp.transpose(xp, (0, 2, 4, 6, 1, 3, 5, 7)).reshape(B, N, K)
    out = jnp.einsum("bnk,ke->bne", xp, conv_w.reshape(E, K).T)
    out = out + conv_b.reshape(1, 1, E) + pos_emb
    return out


if __name__ == "__main__":
    # Small, Conv3d-consistent shapes:
    #   input_shape = (C, D, H, W) = (4, 8, 8, 8), patch_size = 4, embed_dim = 128
    #   -> n_patches = 8*8*8 / 4^3 = 8, K = C*p^3 = 256
    B, C, D, H, W = 2, 4, 8, 8, 8
    patch_size = 4
    embed_dim = 128
    n_patches = (D // patch_size) * (H // patch_size) * (W // patch_size)

    key = jax.random.PRNGKey(0)
    kx, kw, kb, kp = jax.random.split(key, 4)

    x = jax.random.normal(kx, (B, C, D, H, W), dtype=jnp.float32)

    # Conv3d default init: uniform(-1/sqrt(fan_in), 1/sqrt(fan_in))
    fan_in = C * patch_size ** 3
    bound = 1.0 / math.sqrt(fan_in)
    conv_w = jax.random.uniform(
        kw, (embed_dim, C, patch_size, patch_size, patch_size),
        minval=-bound, maxval=bound, dtype=jnp.float32)
    conv_b = jax.random.uniform(kb, (embed_dim,), minval=-bound, maxval=bound,
                                dtype=jnp.float32)
    # PyTorch inits position_embeddings to zeros; use small random values so the
    # add path is actually exercised.
    pos_emb = 0.02 * jax.random.normal(kp, (1, n_patches, embed_dim),
                                       dtype=jnp.float32)

    out = embeddings_forward(x, conv_w, conv_b, pos_emb, patch_size)
    out = jax.block_until_ready(out)

    ref = _reference(x, conv_w, conv_b, pos_emb, patch_size)
    assert out.shape == (B, n_patches, embed_dim)
    assert jnp.allclose(out, ref, atol=1e-4, rtol=1e-4), "mismatch vs reference"

    print("KERNEL_OK")
</pallas_src>

<mosaic_0001>
module attributes {stable_mosaic.version = 11 : i64} {
  func.func @_embed_kernel(%arg0: i32, %arg1: memref<8x256xf32, #tpu.memory_space<vmem>>, %arg2: memref<256x128xf32, #tpu.memory_space<vmem>>, %arg3: memref<8x128xf32, #tpu.memory_space<vmem>>, %arg4: memref<8x128xf32, #tpu.memory_space<vmem>>) attributes {dimension_semantics = [#tpu.dimension_semantics<parallel>], iteration_bounds = array<i64: 2>, scalar_prefetch = 0 : i64, scratch_operands = 0 : i64, tpu.core_type = #tpu.core_type<tc>, window_params = [{transform_indices = @transform_0, window_bounds = array<i64: 8, 256>}, {pipeline_mode = #tpu.pipeline_mode<synchronous>, transform_indices = @transform_1, window_bounds = array<i64: 256, 128>}, {pipeline_mode = #tpu.pipeline_mode<synchronous>, transform_indices = @transform_2, window_bounds = array<i64: 8, 128>}, {transform_indices = @transform_3, window_bounds = array<i64: 8, 128>}]} {
    %c0 = arith.constant 0 : index
    %c0_0 = arith.constant 0 : index
    %0 = vector.load %arg1[%c0, %c0_0] : memref<8x256xf32, #tpu.memory_space<vmem>>, vector<8x256xf32>
    %c0_1 = arith.constant 0 : index
    %c0_2 = arith.constant 0 : index
    %1 = vector.load %arg2[%c0_1, %c0_2] : memref<256x128xf32, #tpu.memory_space<vmem>>, vector<256x128xf32>
    %cst = arith.constant dense<0.000000e+00> : vector<8x128xf32>
    %2 = tpu.matmul %0, %1, %cst {dimension_numbers = #tpu.dot_dimension_numbers<[1], [0], [0], [1], [0, 0, 1, 1], [], []>} : vector<8x256xf32>, vector<256x128xf32>, vector<8x128xf32> -> vector<8x128xf32>
    %c0_3 = arith.constant 0 : index
    %c0_4 = arith.constant 0 : index
    %3 = vector.load %arg3[%c0_3, %c0_4] : memref<8x128xf32, #tpu.memory_space<vmem>>, vector<8x128xf32>
    %4 = arith.addf %2, %3 : vector<8x128xf32>
    %c0_5 = arith.constant 0 : index
    %c0_6 = arith.constant 0 : index
    %5 = vector.load %arg4[%c0_5, %c0_6] : memref<8x128xf32, #tpu.memory_space<vmem>>, vector<8x128xf32>
    tpu.vector_store %arg4[%c0_5, %c0_6], %4 {strides = array<i32>} : memref<8x128xf32, #tpu.memory_space<vmem>>, vector<8x128xf32>,
    return
  }
  func.func @transform_0(%arg0: i32) -> (i32, i32) {
    %c0_i32 = arith.constant 0 : i32
    %c0_i32_0 = arith.constant 0 : i32
    return %arg0, %c0_i32 : i32, i32
  }
  func.func @transform_1(%arg0: i32) -> (i32, i32) {
    %c0_i32 = arith.constant 0 : i32
    %c0_i32_0 = arith.constant 0 : i32
    %c0_i32_1 = arith.constant 0 : i32
    return %c0_i32, %c0_i32_0 : i32, i32
  }
  func.func @transform_2(%arg0: i32) -> (i32, i32) {
    %c0_i32 = arith.constant 0 : i32
    %c0_i32_0 = arith.constant 0 : i32
    %c0_i32_1 = arith.constant 0 : i32
    return %c0_i32, %c0_i32_0 : i32, i32
  }
  func.func @transform_3(%arg0: i32) -> (i32, i32) {
    %c0_i32 = arith.constant 0 : i32
    %c0_i32_0 = arith.constant 0 : i32
    return %arg0, %c0_i32 : i32, i32
  }
}

</mosaic_0001>

<llo_original>
// kernel: tpu_custom_call.1
$region0: #{tpu_custom_call.1}
  #allocation0 [shape = 'u32[]', space=smem, size = 0x4, offset = 0x4, fixed_abs, tag = 'smem constant byte address 0x4 - core index']
  #allocation1 [shape = 'u32[144,128]{1,0:T(1,128)}', space=vmem, size = 0x12000, scoped, tag = 'internal scratch']
  %s0 = inlined_call_operand.hbm [shape: f32[16,256], index: 0, kind: input, shape index: {}]
  %s1 = inlined_call_operand.hbm [shape: f32[256,128], index: 1, kind: input, shape index: {}]
  %s2 = inlined_call_operand.hbm [shape: f32[8,128], index: 2, kind: input, shape index: {}]
  %s3 = inlined_call_operand.hbm [shape: f32[16,128], index: 3, kind: output, shape index: {}]
  %s4 = sld [smem:[#allocation0]]
  $region57: #{tpu_custom_call.1} parent=0
    _
  %s6 = ssub.s32 1, %s4
  %s7 = scalar_select 0, %s6, %s4
  $region1: #{tpu_custom_call.1} parent=0
    #allocation2 [shape = 'u8[16384]{0}', space=vmem, size = 0x4000, scoped, tag = 'input window, operand 0']
    #allocation3 [shape = 's32[2]{0}', space=sflag, size = 0x8, scoped, tag = 'scoped memory for tpu_custom_call.1']
    #allocation4 [shape = 's32[2]{0}', space=sflag, size = 0x8, scoped, tag = 'scoped memory for tpu_custom_call.1']
    #allocation5 [shape = 'u8[131072]{0}', space=vmem, size = 0x20000, scoped, tag = 'input window, operand 1, single buffered']
    #allocation6 [shape = 's32[1]{0}', space=sflag, size = 0x4, scoped, tag = 'scoped memory for tpu_custom_call.1']
    #allocation7 [shape = 'u8[4096]{0}', space=vmem, size = 0x1000, scoped, tag = 'input window, operand 2, single buffered']
    #allocation8 [shape = 'u8[8192]{0}', space=vmem, size = 0x2000, scoped, tag = 'output window, operand 0']
    %8 = vsyncpa [#allocation3], 0
    %s9 = scalar_lea.sflag [#allocation3], 1
    %10 = vsyncpa %s9, 0
    %11 = vsyncpa [#allocation6], 0
    %12 = vsyncpa [#allocation4], 0
    %s13 = scalar_lea.sflag [#allocation4], 1
    %14 = vsyncpa %s13, 0
    loop: start=0, step=1, limit=4
    $region2: #{tpu_custom_call.1} parent=1 // loop_pre_header
      _
    $region3: #{tpu_custom_call.1} parent=1 // loop_header
      %s16 = sphi 0, %s20
      %p17 = scmp.ge.s32.totalorder %s16, 4
      %s26 = sphi 0, %s28
      %s29 = sphi 0, %s26
      %s30 = sphi 0, %s29
      %s46 = sphi 0, %s30
      %s50 = sphi 0, %s50
      %s52 = sphi 0, %s50
      %s53 = sphi 0, %s52
      %s67 = sphi 0, %s53
      %s71 = sphi 0, %s71
      %s73 = sphi 0, %s71
      %s74 = sphi 0, %s73
      %s88 = sphi 0, %s74
      %s94 = sphi 0, %s96
      %s97 = sphi 0, %s94
      %s98 = sphi 0, %s97
      %s114 = sphi 0, %s98
    $region4: #{tpu_custom_call.1} parent=1 // loop_header_branch
      %19 = sbr.rel (%p17) target = $region8
    $region5: #{tpu_custom_call.1} parent=1 // loop_body
      %s21 = ssub.s32 %s16, 1
      %s22 = ssub.s32 %s16, 2
      %s23 = sadd.s32 %s16, 1
      %s24 = ssub.s32 %s16, %s23
      %p25 = scmp.eq.s32.totalorder %s24, 0
      %s27 = sadd.s32 %s26, 1
      %s28 = scalar_select %p25, %s26, %s27
      %p31 = pneg %p25
      %p32 = scmp.eq.s32.totalorder %s16, 1
      %p33 = por %p31, %p32
      %p34 = scmp.ne.s32.totalorder %s26, %s29
      %p35 = scmp.eq.s32.totalorder %s16, 0
      %p36 = por %p34, %p35
      %p37 = scmp.ne.s32.totalorder %s26, %s29
      %p38 = scmp.eq.s32.totalorder %s21, 1
      %p39 = por %p37, %p38
      %p40 = scmp.ne.s32.totalorder %s29, %s30
      %p41 = scmp.eq.s32.totalorder %s21, 0
      %p42 = por %p40, %p41
      %p43 = scmp.ne.s32.totalorder %s29, %s30
      %p44 = scmp.eq.s32.totalorder %s22, 1
      %p45 = por %p43, %p44
      %p47 = scmp.ne.s32.totalorder %s30, %s46
      %p48 = scmp.eq.s32.totalorder %s22, 0
      %p49 = por %p47, %p48
      %s51 = sadd.s32 %s50, 1
      %p54 = scmp.eq.s32.totalorder %s16, 1
      %p55 = scmp.ne.s32.totalorder %s50, %s52
      %p56 = scmp.eq.s32.totalorder %s16, 0
      %p57 = por %p55, %p56
      %p58 = scmp.ne.s32.totalorder %s50, %s52
      %p59 = scmp.eq.s32.totalorder %s21, 1
      %p60 = por %p58, %p59
      %p61 = scmp.ne.s32.totalorder %s52, %s53
      %p62 = scmp.eq.s32.totalorder %s21, 0
      %p63 = por %p61, %p62
      %p64 = scmp.ne.s32.totalorder %s52, %s53
      %p65 = scmp.eq.s32.totalorder %s22, 1
      %p66 = por %p64, %p65
      %p68 = scmp.ne.s32.totalorder %s53, %s67
      %p69 = scmp.eq.s32.totalorder %s22, 0
      %p70 = por %p68, %p69
      %s72 = sadd.s32 %s71, 1
      %p75 = scmp.eq.s32.totalorder %s16, 1
      %p76 = scmp.ne.s32.totalorder %s71, %s73
      %p77 = scmp.eq.s32.totalorder %s16, 0
      %p78 = por %p76, %p77
      %p79 = scmp.ne.s32.totalorder %s71, %s73
      %p80 = scmp.eq.s32.totalorder %s21, 1
      %p81 = por %p79, %p80
      %p82 = scmp.ne.s32.totalorder %s73, %s74
      %p83 = scmp.eq.s32.totalorder %s21, 0
      %p84 = por %p82, %p83
      %p85 = scmp.ne.s32.totalorder %s73, %s74
      %p86 = scmp.eq.s32.totalorder %s22, 1
      %p87 = por %p85, %p86
      %p89 = scmp.ne.s32.totalorder %s74, %s88
      %p90 = scmp.eq.s32.totalorder %s22, 0
      %p91 = por %p89, %p90
      %s92 = ssub.s32 %s16, %s23
      %p93 = scmp.eq.s32.totalorder %s92, 0
      %s95 = sadd.s32 %s94, 1
      %s96 = scalar_select %p93, %s94, %s95
      %p99 = pneg %p93
      %p100 = scmp.eq.s32.totalorder %s16, 1
      %p101 = por %p99, %p100
      %p102 = scmp.ne.s32.totalorder %s94, %s97
      %p103 = scmp.eq.s32.totalorder %s16, 0
      %p104 = por %p102, %p103
      %p105 = scmp.ne.s32.totalorder %s94, %s97
      %p106 = scmp.eq.s32.totalorder %s21, 1
      %p107 = por %p105, %p106
      %p108 = scmp.ne.s32.totalorder %s97, %s98
      %p109 = scmp.eq.s32.totalorder %s21, 0
      %p110 = por %p108, %p109
      %p111 = scmp.ne.s32.totalorder %s97, %s98
      %p112 = scmp.eq.s32.totalorder %s22, 1
      %p113 = por %p111, %p112
      %p115 = scmp.ne.s32.totalorder %s98, %s114
      %p116 = scmp.eq.s32.totalorder %s22, 0
      %p117 = por %p115, %p116
      %p118 = scmp.le.s32.totalorder 1, %s16
      %p119 = scmp.lt.s32.totalorder %s16, 3
      %p120 = pnand %p118, %p119
      %p121 = pneg %p120
      // Predicated region
      $region9: #{tpu_custom_call.1} parent=5 // pred_check
        _
      $region10: #{tpu_custom_call.1} parent=5 // pred_check_branch
        %123 = sbr.rel (%p120) target = $region12
      $region11: #{tpu_custom_call.1} parent=5 // pred_region
        %s124 = ssub.s32 %s16, 1
        // Predicated region
        $region13: #{tpu_custom_call.1} parent=11 // pred_check
          %p125 = pneg %p63
        $region14: #{tpu_custom_call.1} parent=11 // pred_check_branch
          %127 = sbr.rel (%p125) target = $region16
        $region15: #{tpu_custom_call.1} parent=11 // pred_region
          %s129 = ssub.s32 4096, 4096
          %130 = vsyncadd [#allocation6], %s129
          %s131 = sshll.u32 [#allocation5], 4
          %s132 = int_to_ptr.vmem [resolvable:$true] %s131
          %137 = dma.hbm_to_vmem [thread:$0]  %s1, 4096, %s132, [#allocation6], 128, 128, 8
        $region16: #{tpu_custom_call.1} parent=11 // pred_fallthru
          _
        // Predicated region
        $region17: #{tpu_custom_call.1} parent=11 // pred_check
          %p138 = pneg %p84
        $region18: #{tpu_custom_call.1} parent=11 // pred_check_branch
          %140 = sbr.rel (%p138) target = $region20
        $region19: #{tpu_custom_call.1} parent=11 // pred_region
          %s142 = ssub.s32 128, 128
          %143 = vsyncadd [#allocation6], %s142
          %s145 = sshll.u32 [#allocation7], 4
          %s146 = int_to_ptr.vmem [resolvable:$true] %s145
          %148 = dma.hbm_to_vmem [thread:$0]  %s2, 128, %s146, [#allocation6]
        $region20: #{tpu_custom_call.1} parent=11 // pred_fallthru
          _
      $region12: #{tpu_custom_call.1} parent=5 // pred_fallthru
        _
      %p149 = scmp.lt.s32.totalorder %s16, 2
      // Predicated region
      $region21: #{tpu_custom_call.1} parent=5 // pred_check
        %p150 = pneg %p149
      $region22: #{tpu_custom_call.1} parent=5 // pred_check_branch
        %152 = sbr.rel (%p150) target = $region24
      $region23: #{tpu_custom_call.1} parent=5 // pred_region
        // Predicated region
        $region25: #{tpu_custom_call.1} parent=23 // pred_check
          %p153 = pneg %p36
        $region26: #{tpu_custom_call.1} parent=23 // pred_check_branch
          %155 = sbr.rel (%p153) target = $region28
        $region27: #{tpu_custom_call.1} parent=23 // pred_region
          %s156 = sand.u32 %s26, 1
          %s157 = scalar_lea.sflag [#allocation3], %s156
          %s158 = sand.u32 %s26, 1
          %s159 = smul.addr %s158, 16
          %s160 = scalar_lea.vmem [#allocation2], %s159
          %s162 = ssub.s32 256, 256
          %163 = vsyncadd %s157, %s162
          %s164 = smul.addr %s16, 2
          %s165 = smul.addr %s164, 128
          %s166 = scalar_lea.hbm %s0, %s165
          %s168 = sshll.u32 %s160, 4
          %s169 = int_to_ptr.vmem [resolvable:$true] %s168
          %171 = dma.hbm_to_vmem [thread:$0]  %s166, 256, %s169, %s157
        $region28: #{tpu_custom_call.1} parent=23 // pred_fallthru
          _
      $region24: #{tpu_custom_call.1} parent=5 // pred_fallthru
        _
      %p172 = scmp.le.s32.totalorder 1, %s16
      %p173 = scmp.lt.s32.totalorder %s16, 3
      %p174 = pnand %p172, %p173
      %p175 = pneg %p174
      // Predicated region
      $region29: #{tpu_custom_call.1} parent=5 // pred_check
        _
      $region30: #{tpu_custom_call.1} parent=5 // pred_check_branch
        %177 = sbr.rel (%p174) target = $region32
      $region31: #{tpu_custom_call.1} parent=5 // pred_region
        %s178 = ssub.s32 %s16, 1
        %s179 = sand.u32 %s29, 1
        %s180 = scalar_lea.sflag [#allocation3], %s179
        %s181 = sand.u32 %s29, 1
        %s182 = smul.addr %s181, 16
        %s183 = scalar_lea.vmem [#allocation2], %s182
        // Predicated region
        $region33: #{tpu_custom_call.1} parent=31 // pred_check
          %p184 = pneg %p42
        $region34: #{tpu_custom_call.1} parent=31 // pred_check_branch
          %186 = sbr.rel (%p184) target = $region36
        $region35: #{tpu_custom_call.1} parent=31 // pred_region
          %187 = dma.done %s180, 256
        $region36: #{tpu_custom_call.1} parent=31 // pred_fallthru
          _
        // Predicated region
        $region37: #{tpu_custom_call.1} parent=31 // pred_check
          %p188 = pneg %p63
        $region38: #{tpu_custom_call.1} parent=31 // pred_check_branch
          %190 = sbr.rel (%p188) target = $region40
        $region39: #{tpu_custom_call.1} parent=31 // pred_region
          %191 = dma.done [#allocation6], 4096
        $region40: #{tpu_custom_call.1} parent=31 // pred_fallthru
          _
        // Predicated region
        $region41: #{tpu_custom_call.1} parent=31 // pred_check
          %p192 = pneg %p84
        $region42: #{tpu_custom_call.1} parent=31 // pred_check_branch
          %194 = sbr.rel (%p192) target = $region44
        $region43: #{tpu_custom_call.1} parent=31 // pred_region
          %195 = dma.done [#allocation6], 128
        $region44: #{tpu_custom_call.1} parent=31 // pred_fallthru
          _
        %s196 = sand.u32 %s29, 1
        %s197 = scalar_lea.sflag [#allocation3], %s196
        %s198 = sand.u32 %s29, 1
        %s199 = smul.addr %s198, 16
        %s200 = scalar_lea.vmem [#allocation2], %s199
        %p201 = pneg %p42
        %p202 = pneg %p39
        %p203 = pneg %p63
        %p204 = pneg %p60
        %p205 = pneg %p84
        %p206 = pneg %p81
        %p207 = pneg %p110
        %p208 = pneg %p107
        %s209 = sand.u32 %s97, 1
        %s210 = scalar_lea.sflag [#allocation4], %s209
        %s211 = sand.u32 %s97, 1
        %s212 = smul.addr %s211, 8
        %s213 = scalar_lea.vmem [#allocation8], %s212
        %v214 = vld [vmem:[%s183] sm:$0xff]
        %v215 = vld [vmem:[%s183 + $0x8] sm:$0xff]
        %v216 = vld [vmem:[#allocation5] sm:$0xff]
        %v217 = vld [vmem:[#allocation5 + $0x8] sm:$0xff]
        %v218 = vld [vmem:[#allocation5 + $0x10] sm:$0xff]
        %v219 = vld [vmem:[#allocation5 + $0x18] sm:$0xff]
        %v220 = vld [vmem:[#allocation5 + $0x20] sm:$0xff]
        %v221 = vld [vmem:[#allocation5 + $0x28] sm:$0xff]
        %v222 = vld [vmem:[#allocation5 + $0x30] sm:$0xff]
        %v223 = vld [vmem:[#allocation5 + $0x38] sm:$0xff]
        %v224 = vld [vmem:[#allocation5 + $0x40] sm:$0xff]
        %v225 = vld [vmem:[#allocation5 + $0x48] sm:$0xff]
        %v226 = vld [vmem:[#allocation5 + $0x50] sm:$0xff]
        %v227 = vld [vmem:[#allocation5 + $0x58] sm:$0xff]
        %v228 = vld [vmem:[#allocation5 + $0x60] sm:$0xff]
        %v229 = vld [vmem:[#allocation5 + $0x68] sm:$0xff]
        %v230 = vld [vmem:[#allocation5 + $0x70] sm:$0xff]
        %v231 = vld [vmem:[#allocation5 + $0x78] sm:$0xff]
        %v232 = vld [vmem:[#allocation5 + $0x80] sm:$0xff]
        %v233 = vld [vmem:[#allocation5 + $0x88] sm:$0xff]
        %v234 = vld [vmem:[#allocation5 + $0x90] sm:$0xff]
        %v235 = vld [vmem:[#allocation5 + $0x98] sm:$0xff]
        %v236 = vld [vmem:[#allocation5 + $0xa0] sm:$0xff]
        %v237 = vld [vmem:[#allocation5 + $0xa8] sm:$0xff]
        %v238 = vld [vmem:[#allocation5 + $0xb0] sm:$0xff]
        %v239 = vld [vmem:[#allocation5 + $0xb8] sm:$0xff]
        %v240 = vld [vmem:[#allocation5 + $0xc0] sm:$0xff]
        %v241 = vld [vmem:[#allocation5 + $0xc8] sm:$0xff]
        %v242 = vld [vmem:[#allocation5 + $0xd0] sm:$0xff]
        %v243 = vld [vmem:[#allocation5 + $0xd8] sm:$0xff]
        %v244 = vld [vmem:[#allocation5 + $0xe0] sm:$0xff]
        %v245 = vld [vmem:[#allocation5 + $0xe8] sm:$0xff]
        %v246 = vld [vmem:[#allocation5 + $0xf0] sm:$0xff]
        %v247 = vld [vmem:[#allocation5 + $0xf8] sm:$0xff]
        %v248 = vld [vmem:[#allocation7] sm:$0xff]
        %249 = vmatprep.subr.mxu0 0.0
        %250 = vmatpush1.msra.mxu0 %v231
        %251 = vmatprep.subr.mxu0 0.0
        %252 = vmatpush1.msra.mxu0 %v230
        %253 = vmatprep.subr.mxu0 0.0
        %254 = vmatpush1.msra.mxu0 %v229
        %255 = vmatprep.subr.mxu0 0.0
        %256 = vmatpush1.msra.mxu0 %v228
        %257 = vmatprep.subr.mxu0 0.0
        %258 = vmatpush1.msra.mxu0 %v227
        %259 = vmatprep.subr.mxu0 0.0
        %260 = vmatpush1.msra.mxu0 %v226
        %261 = vmatprep.subr.mxu0 0.0
        %262 = vmatpush1.msra.mxu0 %v225
        %263 = vmatprep.subr.mxu0 0.0
        %264 = vmatpush1.msra.mxu0 %v224
        %265 = vmatprep.subr.mxu0 0.0
        %266 = vmatpush1.msra.mxu0 %v223
        %267 = vmatprep.subr.mxu0 0.0
        %268 = vmatpush1.msra.mxu0 %v222
        %269 = vmatprep.subr.mxu0 0.0
        %270 = vmatpush1.msra.mxu0 %v221
        %271 = vmatprep.subr.mxu0 0.0
        %272 = vmatpush1.msra.mxu0 %v220
        %273 = vmatprep.subr.mxu0 0.0
        %274 = vmatpush1.msra.mxu0 %v219
        %275 = vmatprep.subr.mxu0 0.0
        %276 = vmatpush1.msra.mxu0 %v218
        %277 = vmatprep.subr.mxu0 0.0
        %278 = vmatpush1.msra.mxu0 %v217
        %279 = vmatprep.subr.mxu0 0.0
        %280 = vmatpush1.msra.mxu0 %v216
        %281 = vmatprep.subr.mxu0 0.0
        %282 = vmatpush2.msra.mxu0 %v247
        %283 = vmatprep.subr.mxu0 0.0
        %284 = vmatpush2.msra.mxu0 %v246
        %285 = vmatprep.subr.mxu0 0.0
        %286 = vmatpush2.msra.mxu0 %v245
        %287 = vmatprep.subr.mxu0 0.0
        %288 = vmatpush2.msra.mxu0 %v244
        %289 = vmatprep.subr.mxu0 0.0
        %290 = vmatpush2.msra.mxu0 %v243
        %291 = vmatprep.subr.mxu0 0.0
        %292 = vmatpush2.msra.mxu0 %v242
        %293 = vmatprep.subr.mxu0 0.0
        %294 = vmatpush2.msra.mxu0 %v241
        %295 = vmatprep.subr.mxu0 0.0
        %296 = vmatpush2.msra.mxu0 %v240
        %297 = vmatprep.subr.mxu0 0.0
        %298 = vmatpush2.msra.mxu0 %v239
        %299 = vmatprep.subr.mxu0 0.0
        %300 = vmatpush2.msra.mxu0 %v238
        %301 = vmatprep.subr.mxu0 0.0
        %302 = vmatpush2.msra.mxu0 %v237
        %303 = vmatprep.subr.mxu0 0.0
        %304 = vmatpush2.msra.mxu0 %v236
        %305 = vmatprep.subr.mxu0 0.0
        %306 = vmatpush2.msra.mxu0 %v235
        %307 = vmatprep.subr.mxu0 0.0
        %308 = vmatpush2.msra.mxu0 %v234
        %309 = vmatprep.subr.mxu0 0.0
        %310 = vmatpush2.msra.mxu0 %v233
        %311 = vmatprep.subr.mxu0 0.0
        %312 = vmatpush2.msra.mxu0 %v232
        %313 = vmatprep.mubr.f32.mxu0 %v215
        %314 = vmatmul.mubr.f32.gmra.mxu0 %v214
        %v315 = vpop.f32.mrf.mxu0
        %v316 = vadd.f32 %v248, %v315
        %v317 = vpop.f32.mrf.mxu0
        %318 = vdwg.mxu0
        %319 = vst [vmem:[%s213] sm:$0xff] %v316
        %s320 = sand.u32 %s97, 1
        %s321 = scalar_lea.sflag [#allocation4], %s320
        %s322 = sand.u32 %s97, 1
        %s323 = smul.addr %s322, 8
        %s324 = scalar_lea.vmem [#allocation8], %s323
        // Predicated region
        $region45: #{tpu_custom_call.1} parent=31 // pred_check
          %p325 = pneg %p107
        $region46: #{tpu_custom_call.1} parent=31 // pred_check_branch
          %327 = sbr.rel (%p325) target = $region48
        $region47: #{tpu_custom_call.1} parent=31 // pred_region
          %s329 = ssub.s32 128, 128
          %330 = vsyncadd %s321, %s329
          %s331 = smul.addr %s21, 128
          %s332 = scalar_lea.hbm %s3, %s331
          %s334 = sshll.u32 %s324, 4
          %s335 = int_to_ptr.vmem [resolvable:$true] %s334
          %337 = dma.vmem_to_hbm [thread:$0]  %s335, 128, %s332, %s321
        $region48: #{tpu_custom_call.1} parent=31 // pred_fallthru
          _
      $region32: #{tpu_custom_call.1} parent=5 // pred_fallthru
        _
      %p338 = scmp.le.s32.totalorder 2, %s16
      // Predicated region
      $region49: #{tpu_custom_call.1} parent=5 // pred_check
        %p339 = pneg %p338
      $region50: #{tpu_custom_call.1} parent=5 // pred_check_branch
        %341 = sbr.rel (%p339) target = $region52
      $region51: #{tpu_custom_call.1} parent=5 // pred_region
        %s342 = ssub.s32 %s16, 2
        // Predicated region
        $region53: #{tpu_custom_call.1} parent=51 // pred_check
          %p343 = pneg %p113
        $region54: #{tpu_custom_call.1} parent=51 // pred_check_branch
          %345 = sbr.rel (%p343) target = $region56
        $region55: #{tpu_custom_call.1} parent=51 // pred_region
          %s346 = sand.u32 %s98, 1
          %s347 = scalar_lea.sflag [#allocation4], %s346
          %s348 = sand.u32 %s98, 1
          %s349 = smul.addr %s348, 8
          %s350 = scalar_lea.vmem [#allocation8], %s349
          %351 = dma.done %s347, 128
        $region56: #{tpu_custom_call.1} parent=51 // pred_fallthru
          _
      $region52: #{tpu_custom_call.1} parent=5 // pred_fallthru
        _
    $region6: #{tpu_custom_call.1} parent=1 // loop_footer
      %s20 = sadd.s32 1, %s16
    $region7: #{tpu_custom_call.1} parent=1 // loop_footer_branch
      %15 = sbr.rel target = $region3
    $region8: #{tpu_custom_call.1} parent=1 // loop_exit
      _
    %352 = vsyncpa [#allocation3], 1
    %s353 = scalar_lea.sflag [#allocation3], 1
    %354 = vsyncpa %s353, 1
    %355 = vsyncpa [#allocation6], 1
    %356 = vsyncpa [#allocation4], 1
    %s357 = scalar_lea.sflag [#allocation4], 1
    %358 = vsyncpa %s357, 1

</llo_original>
